<compile_context>
chip_gen: v5e
topology: v5e:2x2
jax: 0.10.0
libtpu: 0.0.40
codegen_flags: <defaults>
</compile_context>

<pallas_src>
import functools

import jax
import jax.numpy as jnp
from jax.experimental import pallas as pl
from jax.experimental.pallas import tpu as pltpu


def _round_up(x, m):
    return (x + m - 1) // m * m


def prepare_bigram_table(emb_table):
    """Pad + augment the embedding table. Hoist: call once per parameter update.

    Returns (Vr, Vc) float32 where
      rows  0..V-1, cols 0..V-1 : the embedding table (bigram logits),
      rows  0..V-1, col  V      : logsumexp(emb[k, :]) (the per-vocab-row LSE),
      everything else           : zeros (never selected / sliced away).
    """
    V = emb_table.shape[0]
    Vr = _round_up(V, 128)        # rows gathered by token id
    Vc = _round_up(V + 1, 128)    # vocab logits + 1 LSE column (free when V % 128 != 0)
    emb_f32 = emb_table.astype(jnp.float32)
    lse_row = jax.scipy.special.logsumexp(emb_f32, axis=-1)          # (V,)
    emb_aug = jnp.zeros((Vr, Vc), jnp.float32)
    emb_aug = emb_aug.at[:V, :V].set(emb_f32)
    emb_aug = emb_aug.at[:V, V].set(lse_row)
    return emb_aug


def _bigram_train_kernel(tok_ref, emb_ref, logits_ref, loss_ref, *, n_valid, v):
    """One row-tile: embedding gather (one-hot MXU matmul) + CE partial sum.

    tok_ref    : (TM, 2)  int32   col 0 = token ids, col 1 = target ids
    emb_ref    : (Vr, Vc) float32 VMEM-resident augmented table (LSE in column v)
    logits_ref : (TM, Vc) f32/bf16 output tile
    loss_ref   : (1, 1, 128) float32 per-tile partial CE sum (splat across lanes)
    """
    i = pl.program_id(0)
    tile_m = tok_ref.shape[0]
    vr = emb_ref.shape[0]
    vc = emb_ref.shape[1]

    tok = tok_ref[...]                                              # (TM, 2)
    idx = tok[:, 0:1]                                               # (TM, 1)
    tgt = tok[:, 1:2]                                               # (TM, 1)

    # Embedding lookup as one-hot @ table (gather -> MXU matmul, exact in f32).
    col_r = jax.lax.broadcasted_iota(jnp.int32, (tile_m, vr), 1)
    onehot = (col_r == idx).astype(jnp.float32)                     # (TM, Vr)
    logits = jnp.dot(onehot, emb_ref[...],
                     preferred_element_type=jnp.float32)            # (TM, Vc)
    logits_ref[...] = logits.astype(logits_ref.dtype)

    # CE per row: lse - tgt_logit. LSE was folded into column v by the gather above,
    # so a single multiply-reduce against a {-1,0,+1} coefficient mask does both terms.
    col_c = jax.lax.broadcasted_iota(jnp.int32, (tile_m, vc), 1)
    coef = (col_c == v).astype(jnp.float32) - (col_c == tgt).astype(jnp.float32)
    row_loss = jnp.sum(logits * coef, axis=-1, keepdims=True)       # (TM, 1)

    # Mask rows beyond the real token count (tail-tile padding).
    rows = i * tile_m + jax.lax.broadcasted_iota(jnp.int32, (tile_m, 1), 0)
    row_loss = jnp.where(rows < n_valid, row_loss, 0.0)

    loss_ref[...] = jnp.broadcast_to(jnp.sum(row_loss), loss_ref.shape)


def _bigram_loss_kernel(tok_ref, emb_ref, loss_ref, *, n_valid, v):
    """Loss-only variant: no logits writeback (removes almost all HBM store traffic)."""
    i = pl.program_id(0)
    tile_m = tok_ref.shape[0]
    vr = emb_ref.shape[0]
    vc = emb_ref.shape[1]

    tok = tok_ref[...]
    idx = tok[:, 0:1]
    tgt = tok[:, 1:2]

    col_r = jax.lax.broadcasted_iota(jnp.int32, (tile_m, vr), 1)
    onehot = (col_r == idx).astype(jnp.float32)
    logits = jnp.dot(onehot, emb_ref[...], preferred_element_type=jnp.float32)

    col_c = jax.lax.broadcasted_iota(jnp.int32, (tile_m, vc), 1)
    coef = (col_c == v).astype(jnp.float32) - (col_c == tgt).astype(jnp.float32)
    row_loss = jnp.sum(logits * coef, axis=-1, keepdims=True)

    rows = i * tile_m + jax.lax.broadcasted_iota(jnp.int32, (tile_m, 1), 0)
    row_loss = jnp.where(rows < n_valid, row_loss, 0.0)

    loss_ref[...] = jnp.broadcast_to(jnp.sum(row_loss), loss_ref.shape)


def _bigram_logits_kernel(idx_ref, emb_ref, logits_ref):
    """Inference path: embedding gather only (no targets, no CE work)."""
    tile_m = idx_ref.shape[0]
    vr = emb_ref.shape[0]
    idx = idx_ref[...]                                              # (TM, 1)
    col = jax.lax.broadcasted_iota(jnp.int32, (tile_m, vr), 1)
    onehot = (col == idx).astype(jnp.float32)
    logits_ref[...] = jnp.dot(onehot, emb_ref[...],
                              preferred_element_type=jnp.float32
                              ).astype(logits_ref.dtype)


_COMPILER_PARAMS = pltpu.CompilerParams(
    # Per-tile partial sums => the grid is embarrassingly parallel; on v7x the two
    # TensorCores can shard it, on v5e/v6e this is a no-op.
    dimension_semantics=("parallel",),
    vmem_limit_bytes=32 * 1024 * 1024,
)


def _tile_sizes(n, tm):
    tm = min(_round_up(tm, 8), _round_up(n, 8))
    n_pad = _round_up(n, tm)
    return tm, n_pad, n_pad // tm


def bigram_forward(idx, emb_table, targets=None, *, tm=2048,
                   prepared_table=None, logits_dtype=jnp.float32):
    """Mirror of BigramLanguageModel.forward.

    idx:      (B, T) int32  (ids must be < vocab_size; no in-kernel bounds check)
    targets:  (B, T) int32 or None
    returns (logits, loss):
      - targets is None: logits (B, T, V), loss None
      - else:            logits (B*T, V), loss scalar
    """
    B, T = idx.shape
    V = emb_table.shape[0]
    N = B * T

    if prepared_table is None:
        prepared_table = prepare_bigram_table(emb_table)   # hoist this per param update
    Vr, Vc = prepared_table.shape

    TM, N_pad, num_tiles = _tile_sizes(N, tm)
    idx_flat = idx.reshape(-1).astype(jnp.int32)

    if targets is None:
        idx_col = jnp.zeros((N_pad, 1), jnp.int32).at[:N, 0].set(idx_flat)
        logits_p = pl.pallas_call(
            _bigram_logits_kernel,
            out_shape=jax.ShapeDtypeStruct((N_pad, Vc), logits_dtype),
            grid=(num_tiles,),
            in_specs=[
                pl.BlockSpec((TM, 1), lambda i: (i, 0)),
                pl.BlockSpec((Vr, Vc), lambda i: (0, 0)),   # table stays VMEM resident
            ],
            out_specs=pl.BlockSpec((TM, Vc), lambda i: (i, 0)),
            compiler_params=_COMPILER_PARAMS,
        )(idx_col, prepared_table)
        return logits_p[:N, :V].reshape(B, T, V), None

    tok = jnp.zeros((N_pad, 2), jnp.int32)
    tok = tok.at[:N, 0].set(idx_flat)
    tok = tok.at[:N, 1].set(targets.reshape(-1).astype(jnp.int32))

    kernel = functools.partial(_bigram_train_kernel, n_valid=N, v=V)
    logits_p, partials = pl.pallas_call(
        kernel,
        out_shape=(
            jax.ShapeDtypeStruct((N_pad, Vc), logits_dtype),
            jax.ShapeDtypeStruct((num_tiles, 1, 128), jnp.float32),
        ),
        grid=(num_tiles,),
        in_specs=[
            pl.BlockSpec((TM, 2), lambda i: (i, 0)),        # merged idx/tgt stream
            pl.BlockSpec((Vr, Vc), lambda i: (0, 0)),       # table stays VMEM resident
        ],
        out_specs=(
            pl.BlockSpec((TM, Vc), lambda i: (i, 0)),
            pl.BlockSpec((1, 1, 128), lambda i: (i, 0, 0)),
        ),
        compiler_params=_COMPILER_PARAMS,
    )(tok, prepared_table)

    loss = jnp.sum(partials[:, 0, 0]) / N
    # NOTE: the slice back to (N, V) is a separate XLA copy; callers that only need the
    # loss should use bigram_loss() below (no logits writeback, no slice).
    logits = logits_p[:N, :V]
    return logits, loss


def bigram_loss(idx, emb_table, targets, *, tm=2048, prepared_table=None):
    """Loss-only training step: never materializes logits in HBM."""
    B, T = idx.shape
    V = emb_table.shape[0]
    N = B * T

    if prepared_table is None:
        prepared_table = prepare_bigram_table(emb_table)
    Vr, Vc = prepared_table.shape

    TM, N_pad, num_tiles = _tile_sizes(N, tm)

    tok = jnp.zeros((N_pad, 2), jnp.int32)
    tok = tok.at[:N, 0].set(idx.reshape(-1).astype(jnp.int32))
    tok = tok.at[:N, 1].set(targets.reshape(-1).astype(jnp.int32))

    partials = pl.pallas_call(
        functools.partial(_bigram_loss_kernel, n_valid=N, v=V),
        out_shape=jax.ShapeDtypeStruct((num_tiles, 1, 128), jnp.float32),
        grid=(num_tiles,),
        in_specs=[
            pl.BlockSpec((TM, 2), lambda i: (i, 0)),
            pl.BlockSpec((Vr, Vc), lambda i: (0, 0)),
        ],
        out_specs=pl.BlockSpec((1, 1, 128), lambda i: (i, 0, 0)),
        compiler_params=_COMPILER_PARAMS,
    )(tok, prepared_table)
    return jnp.sum(partials[:, 0, 0]) / N


def _reference_forward(idx, emb_table, targets):
    logits = emb_table[idx]                     # (B, T, V)
    B, T, V = logits.shape
    logits2 = logits.reshape(B * T, V)
    tgt = targets.reshape(-1)
    logz = jax.scipy.special.logsumexp(logits2, axis=-1)
    tgt_logit = jnp.take_along_axis(logits2, tgt[:, None], axis=-1)[:, 0]
    loss = jnp.mean(logz - tgt_logit)
    return logits2, loss


if __name__ == "__main__":
    # Small, deterministic setup consistent with the module: vocab of 65 chars,
    # batch=2, seq=8. nn.Embedding default init is N(0, 1).
    vocab_size = 65
    B, T = 2, 8

    key = jax.random.PRNGKey(0)
    k_emb, k_idx, k_tgt = jax.random.split(key, 3)
    emb_table = jax.random.normal(k_emb, (vocab_size, vocab_size), dtype=jnp.float32)
    idx = jax.random.randint(k_idx, (B, T), 0, vocab_size, dtype=jnp.int32)
    targets = jax.random.randint(k_tgt, (B, T), 0, vocab_size, dtype=jnp.int32)

    # Hoisted once "per parameter update" (padding + LSE precompute out of the hot path).
    prepared = prepare_bigram_table(emb_table)

    # Training forward: logits (B*T, V) + scalar CE loss.
    logits, loss = bigram_forward(idx, emb_table, targets, prepared_table=prepared)
    jax.block_until_ready((logits, loss))

    ref_logits, ref_loss = _reference_forward(idx, emb_table, targets)
    assert logits.shape == (B * T, vocab_size)
    assert jnp.allclose(logits, ref_logits, atol=1e-5), "logits mismatch"
    assert jnp.allclose(loss, ref_loss, atol=1e-5), "loss mismatch"

    # Loss-only path (no logits writeback).
    loss_only = bigram_loss(idx, emb_table, targets, prepared_table=prepared)
    jax.block_until_ready(loss_only)
    assert jnp.allclose(loss_only, ref_loss, atol=1e-5), "loss-only mismatch"

    # Inference path (targets=None): (B, T, V) logits, loss None.
    logits_nt, loss_nt = bigram_forward(idx, emb_table, None, prepared_table=prepared)
    jax.block_until_ready(logits_nt)
    assert logits_nt.shape == (B, T, vocab_size) and loss_nt is None
    assert jnp.allclose(logits_nt.reshape(B * T, vocab_size), ref_logits, atol=1e-5)

    # TODO(synk): generate() (autoregressive torch.multinomial sampling loop) is host-side
    # control flow around forward() and is not implemented as a kernel.
    print("KERNEL_OK")
</pallas_src>

<mosaic_0001>
module attributes {stable_mosaic.version = 11 : i64} {
  func.func @_bigram_train_kernel(%arg0: i32, %arg1: memref<16x2xi32, #tpu.memory_space<vmem>>, %arg2: memref<128x128xf32, #tpu.memory_space<vmem>>, %arg3: memref<16x128xf32, #tpu.memory_space<vmem>>, %arg4: memref<1x1x128xf32, #tpu.memory_space<vmem>>) attributes {dimension_semantics = [#tpu.dimension_semantics<parallel>], iteration_bounds = array<i64: 1>, scalar_prefetch = 0 : i64, scratch_operands = 0 : i64, tpu.core_type = #tpu.core_type<tc>, window_params = [{transform_indices = @transform_0, window_bounds = array<i64: 16, 2>}, {pipeline_mode = #tpu.pipeline_mode<synchronous>, transform_indices = @transform_1, window_bounds = array<i64: 128, 128>}, {transform_indices = @transform_2, window_bounds = array<i64: 16, 128>}, {transform_indices = @transform_3, window_bounds = array<i64: 1, 1, 128>}]} {
    %c0 = arith.constant 0 : index
    %c0_0 = arith.constant 0 : index
    %0 = vector.load %arg1[%c0, %c0_0] : memref<16x2xi32, #tpu.memory_space<vmem>>, vector<16x2xi32>
    %1 = vector.extract_strided_slice %0 {offsets = [0, 0], sizes = [16, 1], strides = [1, 1]} : vector<16x2xi32> to vector<16x1xi32>
    %2 = vector.extract_strided_slice %0 {offsets = [0, 1], sizes = [16, 1], strides = [1, 1]} : vector<16x2xi32> to vector<16x1xi32>
    %3 = tpu.iota {dimensions = array<i32: 1>} : vector<16x128xi32>
    %4 = vector.broadcast %1 : vector<16x1xi32> to vector<16x128xi32>
    %5 = arith.cmpi eq, %3, %4 : vector<16x128xi32>
    %6 = arith.extui %5 : vector<16x128xi1> to vector<16x128xi32>
    %7 = arith.sitofp %6 : vector<16x128xi32> to vector<16x128xf32>
    %c0_1 = arith.constant 0 : index
    %c0_2 = arith.constant 0 : index
    %8 = vector.load %arg2[%c0_1, %c0_2] : memref<128x128xf32, #tpu.memory_space<vmem>>, vector<128x128xf32>
    %cst = arith.constant dense<0.000000e+00> : vector<16x128xf32>
    %9 = tpu.matmul %7, %8, %cst {dimension_numbers = #tpu.dot_dimension_numbers<[1], [0], [0], [1], [0, 0, 1, 1], [], []>} : vector<16x128xf32>, vector<128x128xf32>, vector<16x128xf32> -> vector<16x128xf32>
    %c0_3 = arith.constant 0 : index
    %c0_4 = arith.constant 0 : index
    %10 = vector.load %arg3[%c0_3, %c0_4] : memref<16x128xf32, #tpu.memory_space<vmem>>, vector<16x128xf32>
    tpu.vector_store %arg3[%c0_3, %c0_4], %9 {strides = array<i32>} : memref<16x128xf32, #tpu.memory_space<vmem>>, vector<16x128xf32>,
    %11 = tpu.iota {dimensions = array<i32: 1>} : vector<16x128xi32>
    %c65_i32 = arith.constant 65 : i32
    %12 = vector.broadcast %c65_i32 : i32 to vector<16x128xi32>
    %13 = arith.cmpi eq, %11, %12 : vector<16x128xi32>
    %14 = arith.extui %13 : vector<16x128xi1> to vector<16x128xi32>
    %15 = arith.sitofp %14 : vector<16x128xi32> to vector<16x128xf32>
    %16 = vector.broadcast %2 : vector<16x1xi32> to vector<16x128xi32>
    %17 = arith.cmpi eq, %11, %16 : vector<16x128xi32>
    %18 = arith.extui %17 : vector<16x128xi1> to vector<16x128xi32>
    %19 = arith.sitofp %18 : vector<16x128xi32> to vector<16x128xf32>
    %20 = arith.subf %15, %19 : vector<16x128xf32>
    %21 = arith.mulf %9, %20 : vector<16x128xf32>
    %cst_5 = arith.constant dense<0.000000e+00> : vector<16xf32>
    %22 = vector.multi_reduction <add>, %21, %cst_5 [1] : vector<16x128xf32> to vector<16xf32>
    %23 = vector.shape_cast %22 : vector<16xf32> to vector<16x1xf32>
    %c16_i32 = arith.constant 16 : i32
    %24 = arith.muli %arg0, %c16_i32 : i32
    %25 = tpu.iota {dimensions = array<i32: 0>} : vector<16x1xi32>
    %26 = vector.broadcast %24 : i32 to vector<16x1xi32>
    %27 = arith.addi %26, %25 : vector<16x1xi32>
    %c16_i32_6 = arith.constant 16 : i32
    %28 = vector.broadcast %c16_i32_6 : i32 to vector<16x1xi32>
    %29 = arith.cmpi slt, %27, %28 : vector<16x1xi32>
    %cst_7 = arith.constant 0.000000e+00 : f32
    %30 = vector.broadcast %cst_7 : f32 to vector<16x1xf32>
    %31 = arith.select %29, %23, %30 : vector<16x1xi1>, vector<16x1xf32>
    %32 = vector.shape_cast %31 : vector<16x1xf32> to vector<1x16x1xf32>
    %cst_8 = arith.constant dense<0.000000e+00> : vector<1xf32>
    %33 = vector.multi_reduction <add>, %32, %cst_8 [1, 2] : vector<1x16x1xf32> to vector<1xf32>
    %34 = vector.shape_cast %33 : vector<1xf32> to vector<1x1x1xf32>
    %35 = vector.extract %34[0, 0, 0] : f32 from vector<1x1x1xf32>
    %36 = vector.broadcast %35 : f32 to vector<1x1x128xf32>
    %c0_9 = arith.constant 0 : index
    %c0_10 = arith.constant 0 : index
    %c0_11 = arith.constant 0 : index
    %37 = vector.load %arg4[%c0_9, %c0_10, %c0_11] : memref<1x1x128xf32, #tpu.memory_space<vmem>>, vector<1x1x128xf32>
    tpu.vector_store %arg4[%c0_9, %c0_10, %c0_11], %36 {strides = array<i32>} : memref<1x1x128xf32, #tpu.memory_space<vmem>>, vector<1x1x128xf32>,
    return
  }
  func.func @transform_0(%arg0: i32) -> (i32, i32) {
    %c0_i32 = arith.constant 0 : i32
    %c0_i32_0 = arith.constant 0 : i32
    return %arg0, %c0_i32 : i32, i32
  }
  func.func @transform_1(%arg0: i32) -> (i32, i32) {
    %c0_i32 = arith.constant 0 : i32
    %c0_i32_0 = arith.constant 0 : i32
    %c0_i32_1 = arith.constant 0 : i32
    return %c0_i32, %c0_i32_0 : i32, i32
  }
  func.func @transform_2(%arg0: i32) -> (i32, i32) {
    %c0_i32 = arith.constant 0 : i32
    %c0_i32_0 = arith.constant 0 : i32
    return %arg0, %c0_i32 : i32, i32
  }
  func.func @transform_3(%arg0: i32) -> (i32, i32, i32) {
    %c0_i32 = arith.constant 0 : i32
    %c0_i32_0 = arith.constant 0 : i32
    %c0_i32_1 = arith.constant 0 : i32
    return %arg0, %c0_i32, %c0_i32_0 : i32, i32, i32
  }
}

</mosaic_0001>

<llo_original>
// kernel: tpu_custom_call.1
$region0: #{tpu_custom_call.1}
  #allocation0 [shape = 'u32[]', space=smem, size = 0x4, offset = 0x4, fixed_abs, tag = 'smem constant byte address 0x4 - core index']
  #allocation1 [shape = 'u32[72,128]{1,0:T(1,128)}', space=vmem, size = 0x9000, scoped, tag = 'internal scratch']
  %s0 = inlined_call_operand.vmem [shape: s32[16,2], index: 0, kind: input, shape index: {}]
  %s1 = inlined_call_operand.hbm [shape: f32[128,128], index: 1, kind: input, shape index: {}]
  %s2 = inlined_call_operand.hbm [shape: f32[16,128], index: 2, kind: output, shape index: {0}]
  %s3 = inlined_call_operand.hbm [shape: f32[1,1,128], index: 3, kind: output, shape index: {1}]
  %4 = xla_tuple %s2, %s3
  %s5 = sld [smem:[#allocation0]]
  $region30: #{tpu_custom_call.1} parent=0
    _
  %s7 = ssub.s32 1, %s5
  %s8 = scalar_select 0, %s7, %s5
  $region1: #{tpu_custom_call.1} parent=0
    #allocation2 [shape = 'u8[65536]{0}', space=vmem, size = 0x10000, scoped, tag = 'input window, operand 1, single buffered']
    #allocation3 [shape = 's32[1]{0}', space=sflag, size = 0x4, scoped, tag = 'scoped memory for tpu_custom_call.1']
    #allocation4 [shape = 's32[1]{0}', space=sflag, size = 0x4, scoped, tag = 'scoped memory for tpu_custom_call.1']
    #allocation5 [shape = 'u8[8192]{0}', space=vmem, size = 0x2000, scoped, tag = 'output window, operand 0, single buffered']
    #allocation6 [shape = 'u8[512]{0}', space=vmem, size = 0x400, scoped, tag = 'output window, operand 1, single buffered']
    #allocation7 [shape = 's32[1]{0}', space=sflag, size = 0x4, scoped, tag = 'scoped memory for tpu_custom_call.1']
    %9 = vsyncpa [#allocation3], 0
    %10 = vsyncpa [#allocation4], 0
    %11 = vsyncpa [#allocation7], 0
    // Predicated region
    $region2: #{tpu_custom_call.1} parent=1 // pred_check
      _
    $region3: #{tpu_custom_call.1} parent=1 // pred_check_branch
      %13 = sbr.rel (0) target = $region5
    $region4: #{tpu_custom_call.1} parent=1 // pred_region
      _
    $region5: #{tpu_custom_call.1} parent=1 // pred_fallthru
      _
    // Predicated region
    $region6: #{tpu_custom_call.1} parent=1 // pred_check
      _
    $region7: #{tpu_custom_call.1} parent=1 // pred_check_branch
      %15 = sbr.rel (0) target = $region9
    $region8: #{tpu_custom_call.1} parent=1 // pred_region
      %17 = vsyncadd [#allocation3], 0
      %s18 = sshll.u32 %s1, 4
      %s19 = int_to_ptr.hbm [resolvable:$true] %s18
      %s20 = sshll.u32 [#allocation2], 4
      %s21 = int_to_ptr.vmem [resolvable:$true] %s20
      %26 = dma.hbm_to_vmem [thread:$0]  %s19, 2048, %s21, [#allocation3], 128, 128, 8
    $region9: #{tpu_custom_call.1} parent=1 // pred_fallthru
      _
    // Predicated region
    $region10: #{tpu_custom_call.1} parent=1 // pred_check
      _
    $region11: #{tpu_custom_call.1} parent=1 // pred_check_branch
      %28 = sbr.rel (0) target = $region13
    $region12: #{tpu_custom_call.1} parent=1 // pred_region
      %30 = dma.done [#allocation3], 2048
    $region13: #{tpu_custom_call.1} parent=1 // pred_fallthru
      _
    %v31 = vld [vmem:[%s0] sm:$0xff]
    %v32 = vld [vmem:[%s0 + $0x8] sm:$0xff]
    %v33 = vlaneseq
    %v34 = vand.u32 %v33, 127
    %35 = vset.pattern.permute.xlu0 0
    %36 = vperm.xlu0 %35, %v31
    %v37 = vpop.permute.xlu0 %36
    %38 = vset.pattern.permute.xlu0 0
    %39 = vperm.xlu0 %38, %v32
    %v40 = vpop.permute.xlu0 %39
    %vm41 = vcmp.eq.s32.totalorder %v34, %v37
    %vm42 = vcmp.eq.s32.totalorder %v34, %v40
    %v43 = vsel %vm41, 1, 0
    %v44 = vsel %vm42, 1, 0
    %v45 = vcvt.s32.f32 %v43
    %v46 = vcvt.s32.f32 %v44
    %v47 = vld [vmem:[#allocation2] sm:$0xff]
    %v48 = vld [vmem:[#allocation2 + $0x8] sm:$0xff]
    %v49 = vld [vmem:[#allocation2 + $0x10] sm:$0xff]
    %v50 = vld [vmem:[#allocation2 + $0x18] sm:$0xff]
    %v51 = vld [vmem:[#allocation2 + $0x20] sm:$0xff]
    %v52 = vld [vmem:[#allocation2 + $0x28] sm:$0xff]
    %v53 = vld [vmem:[#allocation2 + $0x30] sm:$0xff]
    %v54 = vld [vmem:[#allocation2 + $0x38] sm:$0xff]
    %v55 = vld [vmem:[#allocation2 + $0x40] sm:$0xff]
    %v56 = vld [vmem:[#allocation2 + $0x48] sm:$0xff]
    %v57 = vld [vmem:[#allocation2 + $0x50] sm:$0xff]
    %v58 = vld [vmem:[#allocation2 + $0x58] sm:$0xff]
    %v59 = vld [vmem:[#allocation2 + $0x60] sm:$0xff]
    %v60 = vld [vmem:[#allocation2 + $0x68] sm:$0xff]
    %v61 = vld [vmem:[#allocation2 + $0x70] sm:$0xff]
    %v62 = vld [vmem:[#allocation2 + $0x78] sm:$0xff]
    %63 = vmatpush.msra.mxu0 %v62
    %64 = vmatpush.msra.mxu0 %v61
    %65 = vmatpush.msra.mxu0 %v60
    %66 = vmatpush.msra.mxu0 %v59
    %67 = vmatpush.msra.mxu0 %v58
    %68 = vmatpush.msra.mxu0 %v57
    %69 = vmatpush.msra.mxu0 %v56
    %70 = vmatpush.msra.mxu0 %v55
    %71 = vmatpush.msra.mxu0 %v54
    %72 = vmatpush.msra.mxu0 %v53
    %73 = vmatpush.msra.mxu0 %v52
    %74 = vmatpush.msra.mxu0 %v51
    %75 = vmatpush.msra.mxu0 %v50
    %76 = vmatpush.msra.mxu0 %v49
    %77 = vmatpush.msra.mxu0 %v48
    %78 = vmatpush.msra.mxu0 %v47
    %79 = vmatmul.f32.gmra.mxu0 %v45
    %v80 = vpop.f32.mrf.mxu0
    %v81 = vadd.f32 0.0, %v80
    %82 = vmatmul.f32.gmra.mxu0 %v46
    %v83 = vpop.f32.mrf.mxu0
    %v84 = vadd.f32 0.0, %v83
    %85 = vdwg.mxu0
    %86 = vst [vmem:[#allocation5] sm:$0xff] %v81
    %87 = vst [vmem:[#allocation5 + $0x8] sm:$0xff] %v84
    %vm88 = vcmp.eq.s32.totalorder %v34, 65
    %v89 = vsel %vm88, 1, 0
    %v90 = vcvt.s32.f32 %v89
    %91 = vset.pattern.permute.xlu0 1
    %92 = vperm.xlu0 %91, %v31
    %v93 = vpop.permute.xlu0 %92
    %94 = vset.pattern.permute.xlu0 1
    %95 = vperm.xlu0 %94, %v32
    %v96 = vpop.permute.xlu0 %95
    %vm97 = vcmp.eq.s32.totalorder %v34, %v93
    %vm98 = vcmp.eq.s32.totalorder %v34, %v96
    %v99 = vsel %vm97, 1, 0
    %v100 = vsel %vm98, 1, 0
    %v101 = vcvt.s32.f32 %v99
    %v102 = vcvt.s32.f32 %v100
    %v103 = vsub.f32 %v90, %v101
    %v104 = vsub.f32 %v90, %v102
    %v105 = vmul.f32 %v81, %v103
    %v106 = vmul.f32 %v84, %v104
    %107 = vadd.xlane.f32.xlu0 %v105
    %v108 = vpop.xlane.xlu0 %107
    %109 = vadd.xlane.f32.xlu0 %v106
    %v110 = vpop.xlane.xlu0 %109
    %s111 = smul.u32 0, 16
    %v112 = vlaneseq
    %v113 = vshrl.u32 %v112, 7
    %v114 = vadd.s32 %v113, 8
    %v115 = vstv %s111
    %v116 = vadd.s32 %v115, %v113
    %v117 = vadd.s32 %v115, %v114
    %vm118 = vcmp.lt.s32.totalorder %v116, 16
    %vm119 = vcmp.lt.s32.totalorder %v117, 16
    %v120 = vsel %vm118, %v108, 0.0
    %v121 = vsel %vm119, %v110, 0.0
    %vm122 = vcmask 7168
    %v123 = vsel %vm122, %v120, 0.0
    %v124 = vsel %vm122, %v121, 0.0
    %v125 = vadd.f32 %v123, %v124
    %126 = vadd.xlane.f32.xlu0 %v125
    %v127 = vpop.xlane.xlu0 %126
    %v128 = vrot.slane %v127, 4
    %v129 = vadd.f32 %v127, %v128
    %v130 = vrot.slane %v129, 2
    %v131 = vadd.f32 %v129, %v130
    %v132 = vrot.slane %v131, 1
    %v133 = vadd.f32 %v131, %v132
    %s134 = vtos %v133
    %v135 = vstv %s134
    %136 = vst [vmem:[#allocation6] sm:$0x1] %v135
    // Predicated region
    $region14: #{tpu_custom_call.1} parent=1 // pred_check
      _
    $region15: #{tpu_custom_call.1} parent=1 // pred_check_branch
      %138 = sbr.rel (0) target = $region17
    $region16: #{tpu_custom_call.1} parent=1 // pred_region
      %140 = vsyncadd [#allocation4], 0
      %s141 = sshll.u32 [#allocation5], 4
      %s142 = int_to_ptr.vmem [resolvable:$true] %s141
      %s143 = sshll.u32 %s2, 4
      %s144 = int_to_ptr.hbm [resolvable:$true] %s143
      %149 = dma.vmem_to_hbm [thread:$0]  %s142, 256, %s144, [#allocation4], 128, 128, 8
    $region17: #{tpu_custom_call.1} parent=1 // pred_fallthru
      _
    // Predicated region
    $region18: #{tpu_custom_call.1} parent=1 // pred_check
      _
    $region19: #{tpu_custom_call.1} parent=1 // pred_check_branch
      %151 = sbr.rel (0) target = $region21
    $region20: #{tpu_custom_call.1} parent=1 // pred_region
      %153 = vsyncadd [#allocation7], 0
      %s155 = sshll.u32 [#allocation6], 4
      %s156 = int_to_ptr.vmem [resolvable:$true] %s155
      %s157 = sshll.u32 %s3, 4
      %s158 = int_to_ptr.hbm [resolvable:$true] %s157
      %160 = dma.vmem_to_hbm [thread:$0]  %s156, 16, %s158, [#allocation7]
    $region21: #{tpu_custom_call.1} parent=1 // pred_fallthru
      _
    // Predicated region
    $region22: #{tpu_custom_call.1} parent=1 // pred_check
      _
    $region23: #{tpu_custom_call.1} parent=1 // pred_check_branch
      %162 = sbr.rel (0) target = $region25
    $region24: #{tpu_custom_call.1} parent=1 // pred_region
      %164 = dma.done [#allocation4], 256
    $region25: #{tpu_custom_call.1} parent=1 // pred_fallthru
      _
    // Predicated region
    $region26: #{tpu_custom_call.1} parent=1 // pred_check
      _
    $region27: #{tpu_custom_call.1} parent=1 // pred_check_branch
      %166 = sbr.rel (0) target = $region29
    $region28: #{tpu_custom_call.1} parent=1 // pred_region
      %168 = dma.done [#allocation7], 16
    $region29: #{tpu_custom_call.1} parent=1 // pred_fallthru
      _
    %169 = vsyncpa [#allocation3], 1
    %170 = vsyncpa [#allocation4], 1
    %171 = vsyncpa [#allocation7], 1

</llo_original>
